<compile_context>
chip_gen: v7x
topology: tpu7x:2x2x1
jax: 0.10.0
libtpu: 0.0.40
codegen_flags: <defaults>
</compile_context>

<pallas_src>
import jax
import jax.numpy as jnp
from jax.experimental import pallas as pl
from jax.experimental.pallas import tpu as pltpu

_LANE = 128
_SUBLANE_BF16 = 16
_NEG_BIG = -1e30  # softmax mask for padded logit columns (f32 epilogue only)


def _round_up(n, m):
    return ((n + m - 1) // m) * m


def _make_mlp_kernel(num_layers, out_pads):
    """Fused MLP: num_layers x (matmul + bias), ReLU between, softmax at end.

    out_pads[i] is the lane-padded output width of layer i. The padded-column
    softmax mask is pre-baked into the last layer's bias, so no iota/where.
    """

    def kernel(x_ref, *rest):
        o_ref = rest[-1]
        b_ref = rest[-2]
        w_refs = rest[:-2]

        h = x_ref[...]                               # bf16 (TB, in_pad0)
        for i in range(num_layers):
            w = w_refs[i][...]                       # bf16 (in_pad_i, out_pad_i)
            b = b_ref[i:i + 1, :out_pads[i]]         # f32  (1, out_pad_i)
            h = jnp.dot(h.astype(jnp.bfloat16), w,
                        preferred_element_type=jnp.float32) + b
            if i < num_layers - 1:
                h = jnp.maximum(h, 0.0)              # ReLU, f32 epilogue
            # TODO(synk): on v6e/v7x a bf16 bias+ReLU epilogue for hidden
            # layers shaves a few VPU ops; kept f32 for v5e portability and
            # because the final layer / -1e30 mask / softmax must stay f32.

        # Numerically-stable softmax (f32). Padded logits are exactly -1e30
        # (zero weight columns + masked bias), so exp underflows to 0.
        m = jnp.max(h, axis=-1, keepdims=True)
        e = jnp.exp(h - m)
        s = jnp.sum(e, axis=-1, keepdims=True)
        # Exact divide: rows must sum to 1 (these are probabilities); the
        # approx EUP reciprocal only gives ~1e-3 row sums.
        o_ref[...] = (e / s).astype(o_ref.dtype)

    return kernel


class MLPModelPallas:
    """JAX/Pallas port of MLPModel: num_layers Linear, ReLU between, softmax."""

    def __init__(self, key, input_dim, output_dim, hidden_dim, num_layers,
                 block_b=None):
        self.input_dim = input_dim
        self.output_dim = output_dim
        self.hidden_dim = hidden_dim
        self.num_layers = num_layers
        self._block_b = block_b

        # nn.Linear-style init; weights stored transposed as (in, out).
        self.weights, self.biases = [], []
        for i in range(num_layers):
            if i == 0:
                fan_in, fan_out = input_dim, hidden_dim
            elif i == num_layers - 1:
                fan_in, fan_out = hidden_dim, output_dim
            else:
                fan_in, fan_out = hidden_dim, hidden_dim
            key, kw, kb = jax.random.split(key, 3)
            bound = 1.0 / float(fan_in) ** 0.5
            self.weights.append(jax.random.uniform(
                kw, (fan_in, fan_out), jnp.float32, -bound, bound))
            self.biases.append(jax.random.uniform(
                kb, (fan_out,), jnp.float32, -bound, bound))

        # --- pad / cast ONCE (hoisted out of the forward path) ---
        in_dims = [w.shape[0] for w in self.weights]
        out_dims = [w.shape[1] for w in self.weights]
        self._in_pads = tuple(_round_up(d, _LANE) for d in in_dims)
        self._out_pads = tuple(_round_up(d, _LANE) for d in out_dims)

        weights_p = []
        for w, ip, op in zip(self.weights, self._in_pads, self._out_pads):
            wp = jnp.zeros((ip, op), jnp.bfloat16)
            weights_p.append(
                wp.at[:w.shape[0], :w.shape[1]].set(w.astype(jnp.bfloat16)))
        self.weights_p = tuple(weights_p)

        max_out_pad = max(self._out_pads)
        b_packed = jnp.zeros((num_layers, max_out_pad), jnp.float32)
        for i, b in enumerate(self.biases):
            b_packed = b_packed.at[i, :b.shape[0]].set(b.astype(jnp.float32))
        # Bake the softmax column mask into the final bias: padded weight
        # columns are zero, so padded logits become exactly -1e30.
        if output_dim < self._out_pads[-1]:
            b_packed = b_packed.at[
                num_layers - 1, output_dim:self._out_pads[-1]].set(_NEG_BIG)
        self.b_packed = b_packed

        self._kernel = _make_mlp_kernel(num_layers, self._out_pads)
        # One jit wraps pad + pallas_call + output slice so XLA fuses them.
        self._forward = jax.jit(self._forward_impl)

    # --- DynamicsParameterNetwork interface: MLPModel is stateless ---
    def clear_hidden_state(self):
        pass

    def reset_hidden_state(self, batch_size, device=None, dtype=None):
        pass

    def _pick_block_b(self, B):
        if self._block_b is not None:
            return self._block_b
        B16 = _round_up(B, _SUBLANE_BF16)
        if B16 <= _SUBLANE_BF16:
            return B16
        # >=2 grid steps (v7x 2-TC sharding), <=512 rows/tile (v5e/v6e
        # per-step overhead amortization).
        return min(_round_up(B16 // 2, _SUBLANE_BF16), 512)

    def _forward_impl(self, x):
        B, in_dim = x.shape
        in_pad0 = self._in_pads[0]
        out_pad = self._out_pads[-1]
        block_b = self._pick_block_b(B)
        assert block_b % _SUBLANE_BF16 == 0, "bf16 batch tile must be 16-aligned"
        B_pad = _round_up(B, block_b)

        # Single fused pad of the bf16-cast activations (skipped if aligned).
        xb = x.astype(jnp.bfloat16)
        if B_pad != B or in_pad0 != in_dim:
            xb = jnp.pad(xb, ((0, B_pad - B), (0, in_pad0 - in_dim)))

        in_specs = [pl.BlockSpec((block_b, in_pad0), lambda i: (i, 0))]
        for wp in self.weights_p:
            # Weights/bias stay VMEM-resident across all batch tiles.
            # (pipeline_mode=pl.Buffered(1) only matters once hidden_dim is
            #  large enough that double-buffered residents pressure VMEM.)
            in_specs.append(pl.BlockSpec(wp.shape, lambda i: (0, 0)))
        in_specs.append(pl.BlockSpec(self.b_packed.shape, lambda i: (0, 0)))
        out_specs = pl.BlockSpec((block_b, out_pad), lambda i: (i, 0))

        flops = 2 * B_pad * sum(
            ip * op for ip, op in zip(self._in_pads, self._out_pads))
        bytes_accessed = (xb.size * 2 + B_pad * out_pad * 4
                          + sum(w.size * 2 for w in self.weights_p)
                          + self.b_packed.size * 4)
        cost = pl.CostEstimate(flops=flops,
                               transcendentals=B_pad * out_pad,
                               bytes_accessed=bytes_accessed)

        out_p = pl.pallas_call(
            self._kernel,
            out_shape=jax.ShapeDtypeStruct((B_pad, out_pad), jnp.float32),
            grid=(B_pad // block_b,),
            in_specs=in_specs,
            out_specs=out_specs,
            compiler_params=pltpu.CompilerParams(
                dimension_semantics=("parallel",)),
            cost_estimate=cost,
        )(xb, *self.weights_p, self.b_packed)

        # This slice fuses into the same jit (not an eager copy pass).
        return out_p[:B, :self.output_dim]

    def __call__(self, x):
        return self._forward(x)


def mlp_forward_ref(x, weights, biases):
    """Pure-JAX reference with the same bf16-matmul / f32-accumulate math."""
    h = x
    n = len(weights)
    for i, (w, b) in enumerate(zip(weights, biases)):
        h = jnp.dot(h.astype(jnp.bfloat16), w.astype(jnp.bfloat16),
                    preferred_element_type=jnp.float32) + b.astype(jnp.float32)
        if i < n - 1:
            h = jnp.maximum(h, 0.0)
    return jax.nn.softmax(h, axis=-1)


if __name__ == "__main__":
    # KVAE dynamics net: a tiny per-row MLP evaluated over (batch, timesteps)
    # rows; flatten into one lane-dense batch for a single fused pallas_call.
    input_dim, hidden_dim, output_dim, num_layers = 16, 32, 8, 3
    batch, timesteps = 8, 32
    B = batch * timesteps      # 256 rows -> block_b=128, grid=(2,) parallel

    key = jax.random.PRNGKey(0)
    key, kx = jax.random.split(key)
    x = jax.random.normal(kx, (B, input_dim), dtype=jnp.float32)

    model = MLPModelPallas(key, input_dim, output_dim, hidden_dim, num_layers)
    model.reset_hidden_state(batch, None)   # stateless no-op, as in the module
    model.clear_hidden_state()

    out = jax.block_until_ready(model(x))
    assert out.shape == (B, output_dim)

    ref = mlp_forward_ref(x, model.weights, model.biases)
    assert jnp.allclose(out, ref, atol=2e-3, rtol=2e-3), \
        float(jnp.max(jnp.abs(out - ref)))
    row_sums = jnp.sum(out, axis=-1)
    assert jnp.allclose(row_sums, 1.0, atol=1e-4), \
        float(jnp.max(jnp.abs(row_sums - 1.0)))

    print("KERNEL_OK")
</pallas_src>

<mosaic_0001>
module attributes {stable_mosaic.version = 11 : i64} {
  func.func @kernel(%arg0: i32, %arg1: memref<128x128xbf16, #tpu.memory_space<vmem>>, %arg2: memref<128x128xbf16, #tpu.memory_space<vmem>>, %arg3: memref<128x128xbf16, #tpu.memory_space<vmem>>, %arg4: memref<128x128xbf16, #tpu.memory_space<vmem>>, %arg5: memref<3x128xf32, #tpu.memory_space<vmem>>, %arg6: memref<128x128xf32, #tpu.memory_space<vmem>>) attributes {dimension_semantics = [#tpu.dimension_semantics<parallel>], iteration_bounds = array<i64: 2>, scalar_prefetch = 0 : i64, scratch_operands = 0 : i64, tpu.core_type = #tpu.core_type<tc>, window_params = [{transform_indices = @transform_0, window_bounds = array<i64: 128, 128>}, {pipeline_mode = #tpu.pipeline_mode<synchronous>, transform_indices = @transform_1, window_bounds = array<i64: 128, 128>}, {pipeline_mode = #tpu.pipeline_mode<synchronous>, transform_indices = @transform_2, window_bounds = array<i64: 128, 128>}, {pipeline_mode = #tpu.pipeline_mode<synchronous>, transform_indices = @transform_3, window_bounds = array<i64: 128, 128>}, {pipeline_mode = #tpu.pipeline_mode<synchronous>, transform_indices = @transform_4, window_bounds = array<i64: 3, 128>}, {transform_indices = @transform_5, window_bounds = array<i64: 128, 128>}]} {
    %c0 = arith.constant 0 : index
    %c0_0 = arith.constant 0 : index
    %0 = vector.load %arg1[%c0, %c0_0] : memref<128x128xbf16, #tpu.memory_space<vmem>>, vector<128x128xbf16>
    %c0_1 = arith.constant 0 : index
    %c0_2 = arith.constant 0 : index
    %1 = vector.load %arg2[%c0_1, %c0_2] : memref<128x128xbf16, #tpu.memory_space<vmem>>, vector<128x128xbf16>
    %c0_3 = arith.constant 0 : index
    %c0_4 = arith.constant 0 : index
    %2 = vector.load %arg5[%c0_3, %c0_4] : memref<3x128xf32, #tpu.memory_space<vmem>>, vector<1x128xf32>
    %cst = arith.constant dense<0.000000e+00> : vector<128x128xf32>
    %3 = tpu.matmul %0, %1, %cst {dimension_numbers = #tpu.dot_dimension_numbers<[1], [0], [0], [1], [0, 0, 1, 1], [], []>} : vector<128x128xbf16>, vector<128x128xbf16>, vector<128x128xf32> -> vector<128x128xf32>
    %4 = vector.broadcast %2 : vector<1x128xf32> to vector<128x128xf32>
    %5 = arith.addf %3, %4 : vector<128x128xf32>
    %cst_5 = arith.constant 0.000000e+00 : f32
    %6 = vector.broadcast %cst_5 : f32 to vector<128x128xf32>
    %7 = arith.maximumf %5, %6 : vector<128x128xf32>
    %c0_6 = arith.constant 0 : index
    %c0_7 = arith.constant 0 : index
    %8 = vector.load %arg3[%c0_6, %c0_7] : memref<128x128xbf16, #tpu.memory_space<vmem>>, vector<128x128xbf16>
    %c1 = arith.constant 1 : index
    %c0_8 = arith.constant 0 : index
    %9 = vector.load %arg5[%c1, %c0_8] : memref<3x128xf32, #tpu.memory_space<vmem>>, vector<1x128xf32>
    %10 = arith.truncf %7 : vector<128x128xf32> to vector<128x128xbf16>
    %cst_9 = arith.constant dense<0.000000e+00> : vector<128x128xf32>
    %11 = tpu.matmul %10, %8, %cst_9 {dimension_numbers = #tpu.dot_dimension_numbers<[1], [0], [0], [1], [0, 0, 1, 1], [], []>} : vector<128x128xbf16>, vector<128x128xbf16>, vector<128x128xf32> -> vector<128x128xf32>
    %12 = vector.broadcast %9 : vector<1x128xf32> to vector<128x128xf32>
    %13 = arith.addf %11, %12 : vector<128x128xf32>
    %cst_10 = arith.constant 0.000000e+00 : f32
    %14 = vector.broadcast %cst_10 : f32 to vector<128x128xf32>
    %15 = arith.maximumf %13, %14 : vector<128x128xf32>
    %c0_11 = arith.constant 0 : index
    %c0_12 = arith.constant 0 : index
    %16 = vector.load %arg4[%c0_11, %c0_12] : memref<128x128xbf16, #tpu.memory_space<vmem>>, vector<128x128xbf16>
    %c2 = arith.constant 2 : index
    %c0_13 = arith.constant 0 : index
    %17 = vector.load %arg5[%c2, %c0_13] : memref<3x128xf32, #tpu.memory_space<vmem>>, vector<1x128xf32>
    %18 = arith.truncf %15 : vector<128x128xf32> to vector<128x128xbf16>
    %cst_14 = arith.constant dense<0.000000e+00> : vector<128x128xf32>
    %19 = tpu.matmul %18, %16, %cst_14 {dimension_numbers = #tpu.dot_dimension_numbers<[1], [0], [0], [1], [0, 0, 1, 1], [], []>} : vector<128x128xbf16>, vector<128x128xbf16>, vector<128x128xf32> -> vector<128x128xf32>
    %20 = vector.broadcast %17 : vector<1x128xf32> to vector<128x128xf32>
    %21 = arith.addf %19, %20 : vector<128x128xf32>
    %cst_15 = arith.constant dense<0xFF800000> : vector<128xf32>
    %22 = vector.multi_reduction <maximumf>, %21, %cst_15 [1] : vector<128x128xf32> to vector<128xf32>
    %23 = vector.shape_cast %22 : vector<128xf32> to vector<128x1xf32>
    %24 = vector.broadcast %23 : vector<128x1xf32> to vector<128x128xf32>
    %25 = arith.subf %21, %24 : vector<128x128xf32>
    %26 = math.exp %25 : vector<128x128xf32>
    %cst_16 = arith.constant dense<0.000000e+00> : vector<128xf32>
    %27 = vector.multi_reduction <add>, %26, %cst_16 [1] : vector<128x128xf32> to vector<128xf32>
    %28 = vector.shape_cast %27 : vector<128xf32> to vector<128x1xf32>
    %29 = vector.broadcast %28 : vector<128x1xf32> to vector<128x128xf32>
    %30 = arith.divf %26, %29 : vector<128x128xf32>
    %c0_17 = arith.constant 0 : index
    %c0_18 = arith.constant 0 : index
    %31 = vector.load %arg6[%c0_17, %c0_18] : memref<128x128xf32, #tpu.memory_space<vmem>>, vector<128x128xf32>
    tpu.vector_store %arg6[%c0_17, %c0_18], %30 {strides = array<i32>} : memref<128x128xf32, #tpu.memory_space<vmem>>, vector<128x128xf32>,
    return
  }
  func.func @transform_0(%arg0: i32) -> (i32, i32) {
    %c0_i32 = arith.constant 0 : i32
    %c0_i32_0 = arith.constant 0 : i32
    return %arg0, %c0_i32 : i32, i32
  }
  func.func @transform_1(%arg0: i32) -> (i32, i32) {
    %c0_i32 = arith.constant 0 : i32
    %c0_i32_0 = arith.constant 0 : i32
    %c0_i32_1 = arith.constant 0 : i32
    return %c0_i32, %c0_i32_0 : i32, i32
  }
  func.func @transform_2(%arg0: i32) -> (i32, i32) {
    %c0_i32 = arith.constant 0 : i32
    %c0_i32_0 = arith.constant 0 : i32
    %c0_i32_1 = arith.constant 0 : i32
    return %c0_i32, %c0_i32_0 : i32, i32
  }
  func.func @transform_3(%arg0: i32) -> (i32, i32) {
    %c0_i32 = arith.constant 0 : i32
    %c0_i32_0 = arith.constant 0 : i32
    %c0_i32_1 = arith.constant 0 : i32
    return %c0_i32, %c0_i32_0 : i32, i32
  }
  func.func @transform_4(%arg0: i32) -> (i32, i32) {
    %c0_i32 = arith.constant 0 : i32
    %c0_i32_0 = arith.constant 0 : i32
    %c0_i32_1 = arith.constant 0 : i32
    return %c0_i32, %c0_i32_0 : i32, i32
  }
  func.func @transform_5(%arg0: i32) -> (i32, i32) {
    %c0_i32 = arith.constant 0 : i32
    %c0_i32_0 = arith.constant 0 : i32
    return %arg0, %c0_i32 : i32, i32
  }
}

</mosaic_0001>

<llo_original>
// kernel: _forward_impl.1
$region0: #{_forward_impl.1}
  #allocation0 [shape = 'u32[]', space=smem, size = 0x4, offset = 0x4, fixed_abs, tag = 'smem constant byte address 0x4 - core index']
  #allocation1 [shape = 'u32[144,128]{1,0:T(1,128)}', space=vmem, size = 0x12000, scoped, tag = 'internal scratch']
  %s0 = inlined_call_operand.vmem [shape: bf16[256,128], index: 0, kind: input, shape index: {}]
  %s1 = inlined_call_operand.vmem [shape: bf16[128,128], index: 1, kind: input, shape index: {}]
  %s2 = inlined_call_operand.vmem [shape: bf16[128,128], index: 2, kind: input, shape index: {}]
  %s3 = inlined_call_operand.vmem [shape: bf16[128,128], index: 3, kind: input, shape index: {}]
  %s4 = inlined_call_operand.vmem [shape: f32[3,128], index: 4, kind: input, shape index: {}]
  %s5 = inlined_call_operand.vmem [shape: f32[256,128], index: 5, kind: output, shape index: {}]
  %s6 = sld [smem:[#allocation0]]
  $region53: #{_forward_impl.1} parent=0
    _
  %s8 = ssub.s32 1, %s6
  %s9 = scalar_select 0, %s8, %s6
  loop: start=0, step=1, limit=4
  $region2: #{_forward_impl.1} parent=0 // loop_pre_header
    _
  $region3: #{_forward_impl.1} parent=0 // loop_header
    %s11 = sphi 0, %s15
    %p12 = scmp.ge.s32.totalorder %s11, 4
    %s21 = sphi 0, %s23
    %s24 = sphi 0, %s21
    %s25 = sphi 0, %s24
    %s41 = sphi 0, %s25
    %s45 = sphi 0, %s45
    %s47 = sphi 0, %s45
    %s48 = sphi 0, %s47
    %s62 = sphi 0, %s48
    %s66 = sphi 0, %s66
    %s68 = sphi 0, %s66
    %s69 = sphi 0, %s68
    %s83 = sphi 0, %s69
    %s87 = sphi 0, %s87
    %s89 = sphi 0, %s87
    %s90 = sphi 0, %s89
    %s104 = sphi 0, %s90
    %s108 = sphi 0, %s108
    %s110 = sphi 0, %s108
    %s111 = sphi 0, %s110
    %s125 = sphi 0, %s111
    %s131 = sphi 0, %s133
    %s134 = sphi 0, %s131
    %s135 = sphi 0, %s134
    %s151 = sphi 0, %s135
  $region4: #{_forward_impl.1} parent=0 // loop_header_branch
    %14 = sbr.rel (%p12) target = $region8
  $region5: #{_forward_impl.1} parent=0 // loop_body
    %s16 = ssub.s32 %s11, 1
    %s17 = ssub.s32 %s11, 2
    %s18 = sadd.s32 %s11, 1
    %s19 = ssub.s32 %s11, %s18
    %p20 = scmp.eq.s32.totalorder %s19, 0
    %s22 = sadd.s32 %s21, 1
    %s23 = scalar_select %p20, %s21, %s22
    %p26 = pneg %p20
    %p27 = scmp.eq.s32.totalorder %s11, 1
    %p28 = por %p26, %p27
    %p29 = scmp.ne.s32.totalorder %s21, %s24
    %p30 = scmp.eq.s32.totalorder %s11, 0
    %p31 = por %p29, %p30
    %p32 = scmp.ne.s32.totalorder %s21, %s24
    %p33 = scmp.eq.s32.totalorder %s16, 1
    %p34 = por %p32, %p33
    %p35 = scmp.ne.s32.totalorder %s24, %s25
    %p36 = scmp.eq.s32.totalorder %s16, 0
    %p37 = por %p35, %p36
    %p38 = scmp.ne.s32.totalorder %s24, %s25
    %p39 = scmp.eq.s32.totalorder %s17, 1
    %p40 = por %p38, %p39
    %p42 = scmp.ne.s32.totalorder %s25, %s41
    %p43 = scmp.eq.s32.totalorder %s17, 0
    %p44 = por %p42, %p43
    %s46 = sadd.s32 %s45, 1
    %p49 = scmp.eq.s32.totalorder %s11, 1
    %p50 = scmp.ne.s32.totalorder %s45, %s47
    %p51 = scmp.eq.s32.totalorder %s11, 0
    %p52 = por %p50, %p51
    %p53 = scmp.ne.s32.totalorder %s45, %s47
    %p54 = scmp.eq.s32.totalorder %s16, 1
    %p55 = por %p53, %p54
    %p56 = scmp.ne.s32.totalorder %s47, %s48
    %p57 = scmp.eq.s32.totalorder %s16, 0
    %p58 = por %p56, %p57
    %p59 = scmp.ne.s32.totalorder %s47, %s48
    %p60 = scmp.eq.s32.totalorder %s17, 1
    %p61 = por %p59, %p60
    %p63 = scmp.ne.s32.totalorder %s48, %s62
    %p64 = scmp.eq.s32.totalorder %s17, 0
    %p65 = por %p63, %p64
    %s67 = sadd.s32 %s66, 1
    %p70 = scmp.eq.s32.totalorder %s11, 1
    %p71 = scmp.ne.s32.totalorder %s66, %s68
    %p72 = scmp.eq.s32.totalorder %s11, 0
    %p73 = por %p71, %p72
    %p74 = scmp.ne.s32.totalorder %s66, %s68
    %p75 = scmp.eq.s32.totalorder %s16, 1
    %p76 = por %p74, %p75
    %p77 = scmp.ne.s32.totalorder %s68, %s69
    %p78 = scmp.eq.s32.totalorder %s16, 0
    %p79 = por %p77, %p78
    %p80 = scmp.ne.s32.totalorder %s68, %s69
    %p81 = scmp.eq.s32.totalorder %s17, 1
    %p82 = por %p80, %p81
    %p84 = scmp.ne.s32.totalorder %s69, %s83
    %p85 = scmp.eq.s32.totalorder %s17, 0
    %p86 = por %p84, %p85
    %s88 = sadd.s32 %s87, 1
    %p91 = scmp.eq.s32.totalorder %s11, 1
    %p92 = scmp.ne.s32.totalorder %s87, %s89
    %p93 = scmp.eq.s32.totalorder %s11, 0
    %p94 = por %p92, %p93
    %p95 = scmp.ne.s32.totalorder %s87, %s89
    %p96 = scmp.eq.s32.totalorder %s16, 1
    %p97 = por %p95, %p96
    %p98 = scmp.ne.s32.totalorder %s89, %s90
    %p99 = scmp.eq.s32.totalorder %s16, 0
    %p100 = por %p98, %p99
    %p101 = scmp.ne.s32.totalorder %s89, %s90
    %p102 = scmp.eq.s32.totalorder %s17, 1
    %p103 = por %p101, %p102
    %p105 = scmp.ne.s32.totalorder %s90, %s104
    %p106 = scmp.eq.s32.totalorder %s17, 0
    %p107 = por %p105, %p106
    %s109 = sadd.s32 %s108, 1
    %p112 = scmp.eq.s32.totalorder %s11, 1
    %p113 = scmp.ne.s32.totalorder %s108, %s110
    %p114 = scmp.eq.s32.totalorder %s11, 0
    %p115 = por %p113, %p114
    %p116 = scmp.ne.s32.totalorder %s108, %s110
    %p117 = scmp.eq.s32.totalorder %s16, 1
    %p118 = por %p116, %p117
    %p119 = scmp.ne.s32.totalorder %s110, %s111
    %p120 = scmp.eq.s32.totalorder %s16, 0
    %p121 = por %p119, %p120
    %p122 = scmp.ne.s32.totalorder %s110, %s111
    %p123 = scmp.eq.s32.totalorder %s17, 1
    %p124 = por %p122, %p123
    %p126 = scmp.ne.s32.totalorder %s111, %s125
    %p127 = scmp.eq.s32.totalorder %s17, 0
    %p128 = por %p126, %p127
    %s129 = ssub.s32 %s11, %s18
    %p130 = scmp.eq.s32.totalorder %s129, 0
    %s132 = sadd.s32 %s131, 1
    %s133 = scalar_select %p130, %s131, %s132
    %p136 = pneg %p130
    %p137 = scmp.eq.s32.totalorder %s11, 1
    %p138 = por %p136, %p137
    %p139 = scmp.ne.s32.totalorder %s131, %s134
    %p140 = scmp.eq.s32.totalorder %s11, 0
    %p141 = por %p139, %p140
    %p142 = scmp.ne.s32.totalorder %s131, %s134
    %p143 = scmp.eq.s32.totalorder %s16, 1
    %p144 = por %p142, %p143
    %p145 = scmp.ne.s32.totalorder %s134, %s135
    %p146 = scmp.eq.s32.totalorder %s16, 0
    %p147 = por %p145, %p146
    %p148 = scmp.ne.s32.totalorder %s134, %s135
    %p149 = scmp.eq.s32.totalorder %s17, 1
    %p150 = por %p148, %p149
    %p152 = scmp.ne.s32.totalorder %s135, %s151
    %p153 = scmp.eq.s32.totalorder %s17, 0
    %p154 = por %p152, %p153
    %p155 = scmp.le.s32.totalorder 1, %s11
    %p156 = scmp.lt.s32.totalorder %s11, 3
    %p157 = pnand %p155, %p156
    %p158 = pneg %p157
    // Predicated region
    $region9: #{_forward_impl.1} parent=5 // pred_check
      _
    $region10: #{_forward_impl.1} parent=5 // pred_check_branch
      %160 = sbr.rel (%p157) target = $region12
    $region11: #{_forward_impl.1} parent=5 // pred_region
      %s161 = ssub.s32 %s11, 1
      // Predicated region
      $region13: #{_forward_impl.1} parent=11 // pred_check
        %p162 = pneg %p58
      $region14: #{_forward_impl.1} parent=11 // pred_check_branch
        %164 = sbr.rel (%p162) target = $region16
      $region15: #{_forward_impl.1} parent=11 // pred_region
        _
      $region16: #{_forward_impl.1} parent=11 // pred_fallthru
        _
      // Predicated region
      $region17: #{_forward_impl.1} parent=11 // pred_check
        %p165 = pneg %p79
      $region18: #{_forward_impl.1} parent=11 // pred_check_branch
        %167 = sbr.rel (%p165) target = $region20
      $region19: #{_forward_impl.1} parent=11 // pred_region
        _
      $region20: #{_forward_impl.1} parent=11 // pred_fallthru
        _
      // Predicated region
      $region21: #{_forward_impl.1} parent=11 // pred_check
        %p168 = pneg %p100
      $region22: #{_forward_impl.1} parent=11 // pred_check_branch
        %170 = sbr.rel (%p168) target = $region24
      $region23: #{_forward_impl.1} parent=11 // pred_region
        _
      $region24: #{_forward_impl.1} parent=11 // pred_fallthru
        _
      // Predicated region
      $region25: #{_forward_impl.1} parent=11 // pred_check
        %p171 = pneg %p121
      $region26: #{_forward_impl.1} parent=11 // pred_check_branch
        %173 = sbr.rel (%p171) target = $region28
      $region27: #{_forward_impl.1} parent=11 // pred_region
        _
      $region28: #{_forward_impl.1} parent=11 // pred_fallthru
        _
    $region12: #{_forward_impl.1} parent=5 // pred_fallthru
      _
    %p174 = scmp.lt.s32.totalorder %s11, 2
    // Predicated region
    $region29: #{_forward_impl.1} parent=5 // pred_check
      %p175 = pneg %p174
    $region30: #{_forward_impl.1} parent=5 // pred_check_branch
      %177 = sbr.rel (%p175) target = $region32
    $region31: #{_forward_impl.1} parent=5 // pred_region
      // Predicated region
      $region33: #{_forward_impl.1} parent=31 // pred_check
        %p178 = pneg %p31
      $region34: #{_forward_impl.1} parent=31 // pred_check_branch
        %180 = sbr.rel (%p178) target = $region36
      $region35: #{_forward_impl.1} parent=31 // pred_region
        %s181 = smul.u32 16, %s11
        %p182 = scmp.lt.s32.totalorder %s181, 31
        %s183 = scalar_select %p182, %s181, 31
        %s184 = smul.addr %s183, 4
        %s185 = scalar_lea.vmem %s0, %s184
        %s186 = smul.u32 16, %s11
      $region36: #{_forward_impl.1} parent=31 // pred_fallthru
        _
    $region32: #{_forward_impl.1} parent=5 // pred_fallthru
      _
    %p187 = scmp.le.s32.totalorder 1, %s11
    %p188 = scmp.lt.s32.totalorder %s11, 3
    %p189 = pnand %p187, %p188
    %p190 = pneg %p189
    // Predicated region
    $region37: #{_forward_impl.1} parent=5 // pred_check
      _
    $region38: #{_forward_impl.1} parent=5 // pred_check_branch
      %192 = sbr.rel (%p189) target = $region40
    $region39: #{_forward_impl.1} parent=5 // pred_region
      %s193 = ssub.s32 %s11, 1
      %s194 = smul.u32 16, %s16
      %p195 = scmp.lt.s32.totalorder %s194, 31
      %s196 = scalar_select %p195, %s194, 31
      %s197 = smul.addr %s196, 4
      %s198 = scalar_lea.vmem %s0, %s197
      %p199 = pneg %p37
      %p200 = pneg %p34
      %p201 = pneg %p58
      %p202 = pneg %p55
      %p203 = pneg %p79
      %p204 = pneg %p76
      %p205 = pneg %p100
      %p206 = pneg %p97
      %p207 = pneg %p121
      %p208 = pneg %p118
      %p209 = pneg %p147
      %p210 = pneg %p144
      %s211 = smul.u32 16, %s16
      %p212 = scmp.lt.s32.totalorder %s211, 31
      %s213 = scalar_select %p212, %s211, 31
      %s214 = smul.addr %s213, 8
      %s215 = scalar_lea.vmem %s5, %s214
      %s216 = smul.u32 16, %s16
      %p217 = scmp.lt.s32.totalorder %s216, 31
      %s218 = scalar_select %p217, %s216, 31
      %s219 = smul.addr %s218, 4
      %s220 = scalar_lea.vmem %s0, %s219
      %s221 = smul.u32 16, %s16
      %s222 = smul.u32 16, %s16
      %p223 = scmp.lt.s32.totalorder %s222, 31
      %s224 = scalar_select %p223, %s222, 31
      %s225 = smul.addr %s224, 8
      %s226 = scalar_lea.vmem %s5, %s225
      %s227 = smul.u32 16, %s16
      %v229 = vld [vmem:[%s220] sm:$0xf]
      %v230 = vld [vmem:[%s220 + $0x4] sm:$0xf]
      %v231 = vld [vmem:[%s220 + $0x8] sm:$0xf]
      %v232 = vld [vmem:[%s220 + $0xc] sm:$0xf]
      %v233 = vld [vmem:[%s220 + $0x10] sm:$0xf]
      %v234 = vld [vmem:[%s220 + $0x14] sm:$0xf]
      %v235 = vld [vmem:[%s220 + $0x18] sm:$0xf]
      %v236 = vld [vmem:[%s220 + $0x1c] sm:$0xf]
      %v237 = vld [vmem:[%s220 + $0x20] sm:$0xf]
      %v238 = vld [vmem:[%s220 + $0x24] sm:$0xf]
      %v239 = vld [vmem:[%s220 + $0x28] sm:$0xf]
      %v240 = vld [vmem:[%s220 + $0x2c] sm:$0xf]
      %v241 = vld [vmem:[%s220 + $0x30] sm:$0xf]
      %v242 = vld [vmem:[%s220 + $0x34] sm:$0xf]
      %v243 = vld [vmem:[%s220 + $0x38] sm:$0xf]
      %v244 = vld [vmem:[%s220 + $0x3c] sm:$0xf]
      %v245 = vld [vmem:[%s1] sm:$0xf]
      %v246 = vld [vmem:[%s1 + $0x4] sm:$0xf]
      %v247 = vld [vmem:[%s1 + $0x8] sm:$0xf]
      %v248 = vld [vmem:[%s1 + $0xc] sm:$0xf]
      %v249 = vld [vmem:[%s1 + $0x10] sm:$0xf]
      %v250 = vld [vmem:[%s1 + $0x14] sm:$0xf]
      %v251 = vld [vmem:[%s1 + $0x18] sm:$0xf]
      %v252 = vld [vmem:[%s1 + $0x1c] sm:$0xf]
      %v253 = vld [vmem:[%s1 + $0x20] sm:$0xf]
      %v254 = vld [vmem:[%s1 + $0x24] sm:$0xf]
      %v255 = vld [vmem:[%s1 + $0x28] sm:$0xf]
      %v256 = vld [vmem:[%s1 + $0x2c] sm:$0xf]
      %v257 = vld [vmem:[%s1 + $0x30] sm:$0xf]
      %v258 = vld [vmem:[%s1 + $0x34] sm:$0xf]
      %v259 = vld [vmem:[%s1 + $0x38] sm:$0xf]
      %v260 = vld [vmem:[%s1 + $0x3c] sm:$0xf]
      %v261 = vld [vmem:[%s4] sm:$0x1]
      %v262 = vlaneseq
      %v263 = vshrl.u32 %v262, 7
      %v264 = vsub.s32 0, %v263
      %v265 = vrot.slane %v261, %v264
      %v282 = vunpack.c.l.b16 %v229
      %v283 = vunpack.c.l.b16 %v230
      %v284 = vunpack.c.l.b16 %v231
      %v285 = vunpack.c.l.b16 %v232
      %v286 = vunpack.c.l.b16 %v233
      %v287 = vunpack.c.l.b16 %v234
      %v288 = vunpack.c.l.b16 %v235
      %v289 = vunpack.c.l.b16 %v236
      %v290 = vunpack.c.l.b16 %v237
      %v291 = vunpack.c.l.b16 %v238
      %v292 = vunpack.c.l.b16 %v239
      %v293 = vunpack.c.l.b16 %v240
      %v294 = vunpack.c.l.b16 %v241
      %v295 = vunpack.c.l.b16 %v242
      %v296 = vunpack.c.l.b16 %v243
      %v297 = vunpack.c.l.b16 %v244
      %v298 = vpack.c.b16 %v283, %v282
      %v299 = vpack.c.b16 %v285, %v284
      %v300 = vpack.c.b16 %v287, %v286
      %v301 = vpack.c.b16 %v289, %v288
      %v302 = vpack.c.b16 %v291, %v290
      %v303 = vpack.c.b16 %v293, %v292
      %v304 = vpack.c.b16 %v295, %v294
      %v305 = vpack.c.b16 %v297, %v296
      %v330 = vunpack.c.l.b16 %v245
      %v331 = vunpack.c.l.b16 %v246
      %v332 = vunpack.c.l.b16 %v247
      %v333 = vunpack.c.l.b16 %v248
      %v334 = vunpack.c.l.b16 %v249
      %v335 = vunpack.c.l.b16 %v250
      %v336 = vunpack.c.l.b16 %v251
      %v337 = vunpack.c.l.b16 %v252
      %v338 = vunpack.c.l.b16 %v253
      %v339 = vunpack.c.l.b16 %v254
      %v340 = vunpack.c.l.b16 %v255
      %v341 = vunpack.c.l.b16 %v256
      %v342 = vunpack.c.l.b16 %v257
      %v343 = vunpack.c.l.b16 %v258
      %v344 = vunpack.c.l.b16 %v259
      %v345 = vunpack.c.l.b16 %v260
      %v346 = vpack.c.b16 %v331, %v330
      %v347 = vpack.c.b16 %v333, %v332
      %v348 = vpack.c.b16 %v335, %v334
      %v349 = vpack.c.b16 %v337, %v336
      %v350 = vpack.c.b16 %v339, %v338
      %v351 = vpack.c.b16 %v341, %v340
      %v352 = vpack.c.b16 %v343, %v342
      %v353 = vpack.c.b16 %v345, %v344
      %362 = vmatprep.subr.bf16.mxu0 0
      %363 = vmatpush1.bf16.msra.mxu0 %v346
      %364 = vmatprep.subr.bf16.mxu0 0
      %365 = vmatpush1.bf16.msra.mxu0 %v347
      %366 = vmatprep.subr.bf16.mxu0 0
      %367 = vmatpush1.bf16.msra.mxu0 %v348
      %368 = vmatprep.subr.bf16.mxu0 0
      %369 = vmatpush1.bf16.msra.mxu0 %v349
      %370 = vmatprep.subr.bf16.mxu0 0
      %371 = vmatpush1.bf16.msra.mxu0 %v350
      %372 = vmatprep.subr.bf16.mxu0 0
      %373 = vmatpush1.bf16.msra.mxu0 %v351
      %374 = vmatprep.subr.bf16.mxu0 0
      %375 = vmatpush1.bf16.msra.mxu0 %v352
      %376 = vmatprep.subr.bf16.mxu0 0
      %377 = vmatpush1.bf16.msra.mxu0 %v353
      %378 = vmatprep.subr.bf16.mxu0 0
      %379 = vmatpush1.bf16.msra.mxu0 0
      %380 = vmatprep.subr.bf16.mxu0 0
      %381 = vmatpush1.bf16.msra.mxu0 0
      %382 = vmatprep.subr.bf16.mxu0 0
      %383 = vmatpush1.bf16.msra.mxu0 0
      %384 = vmatprep.subr.bf16.mxu0 0
      %385 = vmatpush1.bf16.msra.mxu0 0
      %386 = vmatprep.subr.bf16.mxu0 0
      %387 = vmatpush1.bf16.msra.mxu0 0
      %388 = vmatprep.subr.bf16.mxu0 0
      %389 = vmatpush1.bf16.msra.mxu0 0
      %390 = vmatprep.subr.bf16.mxu0 0
      %391 = vmatpush1.bf16.msra.mxu0 0
      %392 = vmatprep.subr.bf16.mxu0 0
      %393 = vmatpush1.bf16.msra.mxu0 0
      %394 = vmatprep.mubr.bf16.mxu0 0
      %395 = vmatmul.mubr.bf16.gmra.mrb[0].mxu0 %v298
      %v396 = vpop.f32.mrb[0].mxu0
      %v397 = vadd.f32 %v265, %v396
      %v398 = vpop.f32.mrb[0].mxu0
      %v399 = vpop.f32.mrb[0].mxu0
      %v400 = vadd.f32 %v265, %v399
      %v401 = vpop.f32.mrb[0].mxu0
      %402 = vmatprep.mubr.bf16.mxu0 0
      %403 = vmatmul.mubr.bf16.gmra.mrb[0].mxu0 %v299
      %v404 = vpop.f32.mrb[0].mxu0
      %v405 = vadd.f32 %v265, %v404
      %v406 = vpop.f32.mrb[0].mxu0
      %v407 = vpop.f32.mrb[0].mxu0
      %v408 = vadd.f32 %v265, %v407
      %v409 = vpop.f32.mrb[0].mxu0
      %410 = vmatprep.mubr.bf16.mxu0 0
      %411 = vmatmul.mubr.bf16.gmra.mrb[0].mxu0 %v300
      %v412 = vpop.f32.mrb[0].mxu0
      %v413 = vadd.f32 %v265, %v412
      %v414 = vpop.f32.mrb[0].mxu0
      %v415 = vpop.f32.mrb[0].mxu0
      %v416 = vadd.f32 %v265, %v415
      %v417 = vpop.f32.mrb[0].mxu0
      %418 = vmatprep.mubr.bf16.mxu0 0
      %419 = vmatmul.mubr.bf16.gmra.mrb[0].mxu0 %v301
      %v420 = vpop.f32.mrb[0].mxu0
      %v421 = vadd.f32 %v265, %v420
      %v422 = vpop.f32.mrb[0].mxu0
      %v423 = vpop.f32.mrb[0].mxu0
      %v424 = vadd.f32 %v265, %v423
      %v425 = vpop.f32.mrb[0].mxu0
      %426 = vmatprep.mubr.bf16.mxu0 0
      %427 = vmatmul.mubr.bf16.gmra.mrb[0].mxu0 %v302
      %v428 = vpop.f32.mrb[0].mxu0
      %v429 = vadd.f32 %v265, %v428
      %v430 = vpop.f32.mrb[0].mxu0
      %v431 = vpop.f32.mrb[0].mxu0
      %v432 = vadd.f32 %v265, %v431
      %v433 = vpop.f32.mrb[0].mxu0
      %434 = vmatprep.mubr.bf16.mxu0 0
      %435 = vmatmul.mubr.bf16.gmra.mrb[0].mxu0 %v303
      %v436 = vpop.f32.mrb[0].mxu0
      %v437 = vadd.f32 %v265, %v436
      %v438 = vpop.f32.mrb[0].mxu0
      %v439 = vpop.f32.mrb[0].mxu0
      %v440 = vadd.f32 %v265, %v439
      %v441 = vpop.f32.mrb[0].mxu0
      %442 = vmatprep.mubr.bf16.mxu0 0
      %443 = vmatmul.mubr.bf16.gmra.mrb[0].mxu0 %v304
      %v444 = vpop.f32.mrb[0].mxu0
      %v445 = vadd.f32 %v265, %v444
      %v446 = vpop.f32.mrb[0].mxu0
      %v447 = vpop.f32.mrb[0].mxu0
      %v448 = vadd.f32 %v265, %v447
      %v449 = vpop.f32.mrb[0].mxu0
      %450 = vmatprep.mubr.bf16.mxu0 0
      %451 = vmatmul.mubr.bf16.gmra.mrb[0].mxu0 %v305
      %v452 = vpop.f32.mrb[0].mxu0
      %v453 = vadd.f32 %v265, %v452
      %v454 = vpop.f32.mrb[0].mxu0
      %v455 = vpop.f32.mrb[0].mxu0
      %v456 = vadd.f32 %v265, %v455
      %v457 = vpop.f32.mrb[0].mxu0
      %458 = vdwg.mxu0
      %v459 = vmax.f32 %v397, 0.0
      %v460 = vmax.f32 %v400, 0.0
      %v461 = vmax.f32 %v405, 0.0
      %v462 = vmax.f32 %v408, 0.0
      %v463 = vmax.f32 %v413, 0.0
      %v464 = vmax.f32 %v416, 0.0
      %v465 = vmax.f32 %v421, 0.0
      %v466 = vmax.f32 %v424, 0.0
      %v467 = vmax.f32 %v429, 0.0
      %v468 = vmax.f32 %v432, 0.0
      %v469 = vmax.f32 %v437, 0.0
      %v470 = vmax.f32 %v440, 0.0
      %v471 = vmax.f32 %v445, 0.0
      %v472 = vmax.f32 %v448, 0.0
      %v473 = vmax.f32 %v453, 0.0
      %v474 = vmax.f32 %v456, 0.0
      %v475 = vld [vmem:[%s2] sm:$0xf]
      %v476 = vld [vmem:[%s2 + $0x4] sm:$0xf]
      %v477 = vld [vmem:[%s2 + $0x8] sm:$0xf]
      %v478 = vld [vmem:[%s2 + $0xc] sm:$0xf]
      %v479 = vld [vmem:[%s2 + $0x10] sm:$0xf]
      %v480 = vld [vmem:[%s2 + $0x14] sm:$0xf]
      %v481 = vld [vmem:[%s2 + $0x18] sm:$0xf]
      %v482 = vld [vmem:[%s2 + $0x1c] sm:$0xf]
      %v483 = vld [vmem:[%s2 + $0x20] sm:$0xf]
      %v484 = vld [vmem:[%s2 + $0x24] sm:$0xf]
      %v485 = vld [vmem:[%s2 + $0x28] sm:$0xf]
      %v486 = vld [vmem:[%s2 + $0x2c] sm:$0xf]
      %v487 = vld [vmem:[%s2 + $0x30] sm:$0xf]
      %v488 = vld [vmem:[%s2 + $0x34] sm:$0xf]
      %v489 = vld [vmem:[%s2 + $0x38] sm:$0xf]
      %v490 = vld [vmem:[%s2 + $0x3c] sm:$0xf]
      %v491 = vld [vmem:[%s4 + $0x1] sm:$0x1]
      %v492 = vpack.c.bf16 %v460, %v459
      %v493 = vpack.c.bf16 %v462, %v461
      %v494 = vpack.c.bf16 %v464, %v463
      %v495 = vpack.c.bf16 %v466, %v465
      %v496 = vpack.c.bf16 %v468, %v467
      %v497 = vpack.c.bf16 %v470, %v469
      %v498 = vpack.c.bf16 %v472, %v471
      %v499 = vpack.c.bf16 %v474, %v473
      %v500 = vlaneseq
      %v501 = vshrl.u32 %v500, 7
      %v502 = vsub.s32 0, %v501
      %v503 = vrot.slane %v491, %v502
      %v520 = vunpack.c.l.b16 %v475
      %v521 = vunpack.c.l.b16 %v476
      %v522 = vunpack.c.l.b16 %v477
      %v523 = vunpack.c.l.b16 %v478
      %v524 = vunpack.c.l.b16 %v479
      %v525 = vunpack.c.l.b16 %v480
      %v526 = vunpack.c.l.b16 %v481
      %v527 = vunpack.c.l.b16 %v482
      %v528 = vunpack.c.l.b16 %v483
      %v529 = vunpack.c.l.b16 %v484
      %v530 = vunpack.c.l.b16 %v485
      %v531 = vunpack.c.l.b16 %v486
      %v532 = vunpack.c.l.b16 %v487
      %v533 = vunpack.c.l.b16 %v488
      %v534 = vunpack.c.l.b16 %v489
      %v535 = vunpack.c.l.b16 %v490
      %v536 = vpack.c.b16 %v521, %v520
      %v537 = vpack.c.b16 %v523, %v522
      %v538 = vpack.c.b16 %v525, %v524
      %v539 = vpack.c.b16 %v527, %v526
      %v540 = vpack.c.b16 %v529, %v528
      %v541 = vpack.c.b16 %v531, %v530
      %v542 = vpack.c.b16 %v533, %v532
      %v543 = vpack.c.b16 %v535, %v534
      %552 = vmatprep.subr.bf16.mxu0 0
      %553 = vmatpush1.bf16.msra.mxu0 %v536
      %554 = vmatprep.subr.bf16.mxu0 0
      %555 = vmatpush1.bf16.msra.mxu0 %v537
      %556 = vmatprep.subr.bf16.mxu0 0
      %557 = vmatpush1.bf16.msra.mxu0 %v538
      %558 = vmatprep.subr.bf16.mxu0 0
      %559 = vmatpush1.bf16.msra.mxu0 %v539
      %560 = vmatprep.subr.bf16.mxu0 0
      %561 = vmatpush1.bf16.msra.mxu0 %v540
      %562 = vmatprep.subr.bf16.mxu0 0
      %563 = vmatpush1.bf16.msra.mxu0 %v541
      %564 = vmatprep.subr.bf16.mxu0 0
      %565 = vmatpush1.bf16.msra.mxu0 %v542
      %566 = vmatprep.subr.bf16.mxu0 0
      %567 = vmatpush1.bf16.msra.mxu0 %v543
      %568 = vmatprep.subr.bf16.mxu0 0
      %569 = vmatpush1.bf16.msra.mxu0 0
      %570 = vmatprep.subr.bf16.mxu0 0
      %571 = vmatpush1.bf16.msra.mxu0 0
      %572 = vmatprep.subr.bf16.mxu0 0
      %573 = vmatpush1.bf16.msra.mxu0 0
      %574 = vmatprep.subr.bf16.mxu0 0
      %575 = vmatpush1.bf16.msra.mxu0 0
      %576 = vmatprep.subr.bf16.mxu0 0
      %577 = vmatpush1.bf16.msra.mxu0 0
      %578 = vmatprep.subr.bf16.mxu0 0
      %579 = vmatpush1.bf16.msra.mxu0 0
      %580 = vmatprep.subr.bf16.mxu0 0
      %581 = vmatpush1.bf16.msra.mxu0 0
      %582 = vmatprep.subr.bf16.mxu0 0
      %583 = vmatpush1.bf16.msra.mxu0 0
      %584 = vmatprep.mubr.bf16.mxu0 0
      %585 = vmatmul.mubr.bf16.gmra.mrb[0].mxu0 %v492
      %v586 = vpop.f32.mrb[0].mxu0
      %v587 = vadd.f32 %v503, %v586
      %v588 = vpop.f32.mrb[0].mxu0
      %v589 = vpop.f32.mrb[0].mxu0
      %v590 = vadd.f32 %v503, %v589
      %v591 = vpop.f32.mrb[0].mxu0
      %592 = vmatprep.mubr.bf16.mxu0 0
      %593 = vmatmul.mubr.bf16.gmra.mrb[0].mxu0 %v493
      %v594 = vpop.f32.mrb[0].mxu0
      %v595 = vadd.f32 %v503, %v594
      %v596 = vpop.f32.mrb[0].mxu0
      %v597 = vpop.f32.mrb[0].mxu0
      %v598 = vadd.f32 %v503, %v597
      %v599 = vpop.f32.mrb[0].mxu0
      %600 = vmatprep.mubr.bf16.mxu0 0
      %601 = vmatmul.mubr.bf16.gmra.mrb[0].mxu0 %v494
      %v602 = vpop.f32.mrb[0].mxu0
      %v603 = vadd.f32 %v503, %v602
      %v604 = vpop.f32.mrb[0].mxu0
      %v605 = vpop.f32.mrb[0].mxu0
      %v606 = vadd.f32 %v503, %v605
      %v607 = vpop.f32.mrb[0].mxu0
      %608 = vmatprep.mubr.bf16.mxu0 0
      %609 = vmatmul.mubr.bf16.gmra.mrb[0].mxu0 %v495
      %v610 = vpop.f32.mrb[0].mxu0
      %v611 = vadd.f32 %v503, %v610
      %v612 = vpop.f32.mrb[0].mxu0
      %v613 = vpop.f32.mrb[0].mxu0
      %v614 = vadd.f32 %v503, %v613
      %v615 = vpop.f32.mrb[0].mxu0
      %616 = vmatprep.mubr.bf16.mxu0 0
      %617 = vmatmul.mubr.bf16.gmra.mrb[0].mxu0 %v496
      %v618 = vpop.f32.mrb[0].mxu0
      %v619 = vadd.f32 %v503, %v618
      %v620 = vpop.f32.mrb[0].mxu0
      %v621 = vpop.f32.mrb[0].mxu0
      %v622 = vadd.f32 %v503, %v621
      %v623 = vpop.f32.mrb[0].mxu0
      %624 = vmatprep.mubr.bf16.mxu0 0
      %625 = vmatmul.mubr.bf16.gmra.mrb[0].mxu0 %v497
      %v626 = vpop.f32.mrb[0].mxu0
      %v627 = vadd.f32 %v503, %v626
      %v628 = vpop.f32.mrb[0].mxu0
      %v629 = vpop.f32.mrb[0].mxu0
      %v630 = vadd.f32 %v503, %v629
      %v631 = vpop.f32.mrb[0].mxu0
      %632 = vmatprep.mubr.bf16.mxu0 0
      %633 = vmatmul.mubr.bf16.gmra.mrb[0].mxu0 %v498
      %v634 = vpop.f32.mrb[0].mxu0
      %v635 = vadd.f32 %v503, %v634
      %v636 = vpop.f32.mrb[0].mxu0
      %v637 = vpop.f32.mrb[0].mxu0
      %v638 = vadd.f32 %v503, %v637
      %v639 = vpop.f32.mrb[0].mxu0
      %640 = vmatprep.mubr.bf16.mxu0 0
      %641 = vmatmul.mubr.bf16.gmra.mrb[0].mxu0 %v499
      %v642 = vpop.f32.mrb[0].mxu0
      %v643 = vadd.f32 %v503, %v642
      %v644 = vpop.f32.mrb[0].mxu0
      %v645 = vpop.f32.mrb[0].mxu0
      %v646 = vadd.f32 %v503, %v645
      %v647 = vpop.f32.mrb[0].mxu0
      %648 = vdwg.mxu0
      %v649 = vmax.f32 %v587, 0.0
      %v650 = vmax.f32 %v590, 0.0
      %v651 = vmax.f32 %v595, 0.0
      %v652 = vmax.f32 %v598, 0.0
      %v653 = vmax.f32 %v603, 0.0
      %v654 = vmax.f32 %v606, 0.0
      %v655 = vmax.f32 %v611, 0.0
      %v656 = vmax.f32 %v614, 0.0
      %v657 = vmax.f32 %v619, 0.0
      %v658 = vmax.f32 %v622, 0.0
      %v659 = vmax.f32 %v627, 0.0
      %v660 = vmax.f32 %v630, 0.0
      %v661 = vmax.f32 %v635, 0.0
      %v662 = vmax.f32 %v638, 0.0
      %v663 = vmax.f32 %v643, 0.0
      %v664 = vmax.f32 %v646, 0.0
      %v665 = vld [vmem:[%s3] sm:$0xf]
      %v666 = vld [vmem:[%s3 + $0x4] sm:$0xf]
      %v667 = vld [vmem:[%s3 + $0x8] sm:$0xf]
      %v668 = vld [vmem:[%s3 + $0xc] sm:$0xf]
      %v669 = vld [vmem:[%s3 + $0x10] sm:$0xf]
      %v670 = vld [vmem:[%s3 + $0x14] sm:$0xf]
      %v671 = vld [vmem:[%s3 + $0x18] sm:$0xf]
      %v672 = vld [vmem:[%s3 + $0x1c] sm:$0xf]
      %v673 = vld [vmem:[%s3 + $0x20] sm:$0xf]
      %v674 = vld [vmem:[%s3 + $0x24] sm:$0xf]
      %v675 = vld [vmem:[%s3 + $0x28] sm:$0xf]
      %v676 = vld [vmem:[%s3 + $0x2c] sm:$0xf]
      %v677 = vld [vmem:[%s3 + $0x30] sm:$0xf]
      %v678 = vld [vmem:[%s3 + $0x34] sm:$0xf]
      %v679 = vld [vmem:[%s3 + $0x38] sm:$0xf]
      %v680 = vld [vmem:[%s3 + $0x3c] sm:$0xf]
      %v681 = vld [vmem:[%s4 + $0x2] sm:$0x1]
      %v682 = vpack.c.bf16 %v650, %v649
      %v683 = vpack.c.bf16 %v652, %v651
      %v684 = vpack.c.bf16 %v654, %v653
      %v685 = vpack.c.bf16 %v656, %v655
      %v686 = vpack.c.bf16 %v658, %v657
      %v687 = vpack.c.bf16 %v660, %v659
      %v688 = vpack.c.bf16 %v662, %v661
      %v689 = vpack.c.bf16 %v664, %v663
      %v690 = vlaneseq
      %v691 = vshrl.u32 %v690, 7
      %v692 = vsub.s32 0, %v691
      %v693 = vrot.slane %v681, %v692
      %v710 = vunpack.c.l.b16 %v665
      %v711 = vunpack.c.l.b16 %v666
      %v712 = vunpack.c.l.b16 %v667
      %v713 = vunpack.c.l.b16 %v668
      %v714 = vunpack.c.l.b16 %v669
      %v715 = vunpack.c.l.b16 %v670
      %v716 = vunpack.c.l.b16 %v671
      %v717 = vunpack.c.l.b16 %v672
      %v718 = vunpack.c.l.b16 %v673
      %v719 = vunpack.c.l.b16 %v674
      %v720 = vunpack.c.l.b16 %v675
      %v721 = vunpack.c.l.b16 %v676
      %v722 = vunpack.c.l.b16 %v677
      %v723 = vunpack.c.l.b16 %v678
      %v724 = vunpack.c.l.b16 %v679
      %v725 = vunpack.c.l.b16 %v680
      %v726 = vpack.c.b16 %v711, %v710
      %v727 = vpack.c.b16 %v713, %v712
      %v728 = vpack.c.b16 %v715, %v714
      %v729 = vpack.c.b16 %v717, %v716
      %v730 = vpack.c.b16 %v719, %v718
      %v731 = vpack.c.b16 %v721, %v720
      %v732 = vpack.c.b16 %v723, %v722
      %v733 = vpack.c.b16 %v725, %v724
      %742 = vmatprep.subr.bf16.mxu0 0
      %743 = vmatpush1.bf16.msra.mxu0 %v726
      %744 = vmatprep.subr.bf16.mxu0 0
      %745 = vmatpush1.bf16.msra.mxu0 %v727
      %746 = vmatprep.subr.bf16.mxu0 0
      %747 = vmatpush1.bf16.msra.mxu0 %v728
      %748 = vmatprep.subr.bf16.mxu0 0
      %749 = vmatpush1.bf16.msra.mxu0 %v729
      %750 = vmatprep.subr.bf16.mxu0 0
      %751 = vmatpush1.bf16.msra.mxu0 %v730
      %752 = vmatprep.subr.bf16.mxu0 0
      %753 = vmatpush1.bf16.msra.mxu0 %v731
      %754 = vmatprep.subr.bf16.mxu0 0
      %755 = vmatpush1.bf16.msra.mxu0 %v732
      %756 = vmatprep.subr.bf16.mxu0 0
      %757 = vmatpush1.bf16.msra.mxu0 %v733
      %758 = vmatprep.subr.bf16.mxu0 0
      %759 = vmatpush1.bf16.msra.mxu0 0
      %760 = vmatprep.subr.bf16.mxu0 0
      %761 = vmatpush1.bf16.msra.mxu0 0
      %762 = vmatprep.subr.bf16.mxu0 0
      %763 = vmatpush1.bf16.msra.mxu0 0
      %764 = vmatprep.subr.bf16.mxu0 0
      %765 = vmatpush1.bf16.msra.mxu0 0
      %766 = vmatprep.subr.bf16.mxu0 0
      %767 = vmatpush1.bf16.msra.mxu0 0
      %768 = vmatprep.subr.bf16.mxu0 0
      %769 = vmatpush1.bf16.msra.mxu0 0
      %770 = vmatprep.subr.bf16.mxu0 0
      %771 = vmatpush1.bf16.msra.mxu0 0
      %772 = vmatprep.subr.bf16.mxu0 0
      %773 = vmatpush1.bf16.msra.mxu0 0
      %774 = vmatprep.mubr.bf16.mxu0 0
      %775 = vmatmul.mubr.bf16.gmra.mrb[0].mxu0 %v682
      %v776 = vpop.f32.mrb[0].mxu0
      %v777 = vadd.f32 %v693, %v776
      %v778 = vpop.f32.mrb[0].mxu0
      %v779 = vpop.f32.mrb[0].mxu0
      %v780 = vadd.f32 %v693, %v779
      %v781 = vpop.f32.mrb[0].mxu0
      %782 = vmatprep.mubr.bf16.mxu0 0
      %783 = vmatmul.mubr.bf16.gmra.mrb[0].mxu0 %v683
      %v784 = vpop.f32.mrb[0].mxu0
      %v785 = vadd.f32 %v693, %v784
      %v786 = vpop.f32.mrb[0].mxu0
      %v787 = vpop.f32.mrb[0].mxu0
      %v788 = vadd.f32 %v693, %v787
      %v789 = vpop.f32.mrb[0].mxu0
      %790 = vmatprep.mubr.bf16.mxu0 0
      %791 = vmatmul.mubr.bf16.gmra.mrb[0].mxu0 %v684
      %v792 = vpop.f32.mrb[0].mxu0
      %v793 = vadd.f32 %v693, %v792
      %v794 = vpop.f32.mrb[0].mxu0
      %v795 = vpop.f32.mrb[0].mxu0
      %v796 = vadd.f32 %v693, %v795
      %v797 = vpop.f32.mrb[0].mxu0
      %798 = vmatprep.mubr.bf16.mxu0 0
      %799 = vmatmul.mubr.bf16.gmra.mrb[0].mxu0 %v685
      %v800 = vpop.f32.mrb[0].mxu0
      %v801 = vadd.f32 %v693, %v800
      %v802 = vpop.f32.mrb[0].mxu0
      %v803 = vpop.f32.mrb[0].mxu0
      %v804 = vadd.f32 %v693, %v803
      %v805 = vpop.f32.mrb[0].mxu0
      %806 = vmatprep.mubr.bf16.mxu0 0
      %807 = vmatmul.mubr.bf16.gmra.mrb[0].mxu0 %v686
      %v808 = vpop.f32.mrb[0].mxu0
      %v809 = vadd.f32 %v693, %v808
      %v810 = vpop.f32.mrb[0].mxu0
      %v811 = vpop.f32.mrb[0].mxu0
      %v812 = vadd.f32 %v693, %v811
      %v813 = vpop.f32.mrb[0].mxu0
      %814 = vmatprep.mubr.bf16.mxu0 0
      %815 = vmatmul.mubr.bf16.gmra.mrb[0].mxu0 %v687
      %v816 = vpop.f32.mrb[0].mxu0
      %v817 = vadd.f32 %v693, %v816
      %v818 = vpop.f32.mrb[0].mxu0
      %v819 = vpop.f32.mrb[0].mxu0
      %v820 = vadd.f32 %v693, %v819
      %v821 = vpop.f32.mrb[0].mxu0
      %822 = vmatprep.mubr.bf16.mxu0 0
      %823 = vmatmul.mubr.bf16.gmra.mrb[0].mxu0 %v688
      %v824 = vpop.f32.mrb[0].mxu0
      %v825 = vadd.f32 %v693, %v824
      %v826 = vpop.f32.mrb[0].mxu0
      %v827 = vpop.f32.mrb[0].mxu0
      %v828 = vadd.f32 %v693, %v827
      %v829 = vpop.f32.mrb[0].mxu0
      %830 = vmatprep.mubr.bf16.mxu0 0
      %831 = vmatmul.mubr.bf16.gmra.mrb[0].mxu0 %v689
      %v832 = vpop.f32.mrb[0].mxu0
      %v833 = vadd.f32 %v693, %v832
      %v834 = vpop.f32.mrb[0].mxu0
      %v835 = vpop.f32.mrb[0].mxu0
      %v836 = vadd.f32 %v693, %v835
      %v837 = vpop.f32.mrb[0].mxu0
      %838 = vdwg.mxu0
      %839 = vmax.xlane.f32.xlu0 %v777
      %v840 = vpop.xlane.xlu0 %839
      %841 = vmax.xlane.f32.xlu0 %v780
      %v842 = vpop.xlane.xlu0 %841
      %843 = vmax.xlane.f32.xlu0 %v785
      %v844 = vpop.xlane.xlu0 %843
      %845 = vmax.xlane.f32.xlu0 %v788
      %v846 = vpop.xlane.xlu0 %845
      %847 = vmax.xlane.f32.xlu0 %v793
      %v848 = vpop.xlane.xlu0 %847
      %849 = vmax.xlane.f32.xlu0 %v796
      %v850 = vpop.xlane.xlu0 %849
      %851 = vmax.xlane.f32.xlu0 %v801
      %v852 = vpop.xlane.xlu0 %851
      %853 = vmax.xlane.f32.xlu0 %v804
      %v854 = vpop.xlane.xlu0 %853
      %855 = vmax.xlane.f32.xlu0 %v809
      %v856 = vpop.xlane.xlu0 %855
      %857 = vmax.xlane.f32.xlu0 %v812
      %v858 = vpop.xlane.xlu0 %857
      %859 = vmax.xlane.f32.xlu0 %v817
      %v860 = vpop.xlane.xlu0 %859
      %861 = vmax.xlane.f32.xlu0 %v820
      %v862 = vpop.xlane.xlu0 %861
      %863 = vmax.xlane.f32.xlu0 %v825
      %v864 = vpop.xlane.xlu0 %863
      %865 = vmax.xlane.f32.xlu0 %v828
      %v866 = vpop.xlane.xlu0 %865
      %867 = vmax.xlane.f32.xlu0 %v833
      %v868 = vpop.xlane.xlu0 %867
      %869 = vmax.xlane.f32.xlu0 %v836
      %v870 = vpop.xlane.xlu0 %869
      %v871 = vsub.f32 %v777, %v840
      %v872 = vsub.f32 %v780, %v842
      %v873 = vsub.f32 %v785, %v844
      %v874 = vsub.f32 %v788, %v846
      %v875 = vsub.f32 %v793, %v848
      %v876 = vsub.f32 %v796, %v850
      %v877 = vsub.f32 %v801, %v852
      %v878 = vsub.f32 %v804, %v854
      %v879 = vsub.f32 %v809, %v856
      %v880 = vsub.f32 %v812, %v858
      %v881 = vsub.f32 %v817, %v860
      %v882 = vsub.f32 %v820, %v862
      %v883 = vsub.f32 %v825, %v864
      %v884 = vsub.f32 %v828, %v866
      %v885 = vsub.f32 %v833, %v868
      %v886 = vsub.f32 %v836, %v870
      %v887 = vmul.f32 %v871, 1.442695
      %v888 = vpow.pop %v887
      %v889 = vmul.f32 %v872, 1.442695
      %v890 = vpow.pop %v889
      %v891 = vmul.f32 %v873, 1.442695
      %v892 = vpow.pop %v891
      %v893 = vmul.f32 %v874, 1.442695
      %v894 = vpow.pop %v893
      %v895 = vmul.f32 %v875, 1.442695
      %v896 = vpow.pop %v895
      %v897 = vmul.f32 %v876, 1.442695
      %v898 = vpow.pop %v897
      %v899 = vmul.f32 %v877, 1.442695
      %v900 = vpow.pop %v899
      %v901 = vmul.f32 %v878, 1.442695
      %v902 = vpow.pop %v901
      %v903 = vmul.f32 %v879, 1.442695
      %v904 = vpow.pop %v903
      %v905 = vmul.f32 %v880, 1.442695
      %v906 = vpow.pop %v905
      %v907 = vmul.f32 %v881, 1.442695
      %v908 = vpow.pop %v907
      %v909 = vmul.f32 %v882, 1.442695
      %v910 = vpow.pop %v909
      %v911 = vmul.f32 %v883, 1.442695
      %v912 = vpow.pop %v911
      %v913 = vmul.f32 %v884, 1.442695
      %v914 = vpow.pop %v913
      %v915 = vmul.f32 %v885, 1.442695
      %v916 = vpow.pop %v915
      %v917 = vmul.f32 %v886, 1.442695
      %v918 = vpow.pop %v917
      %919 = vadd.xlane.f32.xlu0 %v888
      %v920 = vpop.xlane.xlu0 %919
      %921 = vadd.xlane.f32.xlu0 %v890
      %v922 = vpop.xlane.xlu0 %921
      %923 = vadd.xlane.f32.xlu0 %v892
      %v924 = vpop.xlane.xlu0 %923
      %925 = vadd.xlane.f32.xlu0 %v894
      %v926 = vpop.xlane.xlu0 %925
      %927 = vadd.xlane.f32.xlu0 %v896
      %v928 = vpop.xlane.xlu0 %927
      %929 = vadd.xlane.f32.xlu0 %v898
      %v930 = vpop.xlane.xlu0 %929
      %931 = vadd.xlane.f32.xlu0 %v900
      %v932 = vpop.xlane.xlu0 %931
      %933 = vadd.xlane.f32.xlu0 %v902
      %v934 = vpop.xlane.xlu0 %933
      %935 = vadd.xlane.f32.xlu0 %v904
      %v936 = vpop.xlane.xlu0 %935
      %937 = vadd.xlane.f32.xlu0 %v906
      %v938 = vpop.xlane.xlu0 %937
      %939 = vadd.xlane.f32.xlu0 %v908
      %v940 = vpop.xlane.xlu0 %939
      %941 = vadd.xlane.f32.xlu0 %v910
      %v942 = vpop.xlane.xlu0 %941
      %943 = vadd.xlane.f32.xlu0 %v912
      %v944 = vpop.xlane.xlu0 %943
      %945 = vadd.xlane.f32.xlu0 %v914
      %v946 = vpop.xlane.xlu0 %945
      %947 = vadd.xlane.f32.xlu0 %v916
      %v948 = vpop.xlane.xlu0 %947
      %949 = vadd.xlane.f32.xlu0 %v918
      %v950 = vpop.xlane.xlu0 %949
      %v951 = vrcp.pop %v920
      %v952 = vmul.f32 %v888, %v951
      %v953 = vrcp.pop %v922
      %v954 = vmul.f32 %v890, %v953
      %v955 = vrcp.pop %v924
      %v956 = vmul.f32 %v892, %v955
      %v957 = vrcp.pop %v926
      %v958 = vmul.f32 %v894, %v957
      %v959 = vrcp.pop %v928
      %v960 = vmul.f32 %v896, %v959
      %v961 = vrcp.pop %v930
      %v962 = vmul.f32 %v898, %v961
      %v963 = vrcp.pop %v932
      %v964 = vmul.f32 %v900, %v963
      %v965 = vrcp.pop %v934
      %v966 = vmul.f32 %v902, %v965
      %v967 = vrcp.pop %v936
      %v968 = vmul.f32 %v904, %v967
      %v969 = vrcp.pop %v938
      %v970 = vmul.f32 %v906, %v969
      %v971 = vrcp.pop %v940
      %v972 = vmul.f32 %v908, %v971
      %v973 = vrcp.pop %v942
      %v974 = vmul.f32 %v910, %v973
      %v975 = vrcp.pop %v944
      %v976 = vmul.f32 %v912, %v975
      %v977 = vrcp.pop %v946
      %v978 = vmul.f32 %v914, %v977
      %v979 = vrcp.pop %v948
      %v980 = vmul.f32 %v916, %v979
      %v981 = vrcp.pop %v950
      %v982 = vmul.f32 %v918, %v981
      %983 = vst [vmem:[%s226] sm:$0xff] %v952
      %984 = vst [vmem:[%s226 + $0x8] sm:$0xff] %v954
      %985 = vst [vmem:[%s226 + $0x10] sm:$0xff] %v956
      %986 = vst [vmem:[%s226 + $0x18] sm:$0xff] %v958
      %987 = vst [vmem:[%s226 + $0x20] sm:$0xff] %v960
      %988 = vst [vmem:[%s226 + $0x28] sm:$0xff] %v962
      %989 = vst [vmem:[%s226 + $0x30] sm:$0xff] %v964
      %990 = vst [vmem:[%s226 + $0x38] sm:$0xff] %v966
      %991 = vst [vmem:[%s226 + $0x40] sm:$0xff] %v968
      %992 = vst [vmem:[%s226 + $0x48] sm:$0xff] %v970
      %993 = vst [vmem:[%s226 + $0x50] sm:$0xff] %v972
      %994 = vst [vmem:[%s226 + $0x58] sm:$0xff] %v974
      %995 = vst [vmem:[%s226 + $0x60] sm:$0xff] %v976
      %996 = vst [vmem:[%s226 + $0x68] sm:$0xff] %v978
      %997 = vst [vmem:[%s226 + $0x70] sm:$0xff] %v980
      %998 = vst [vmem:[%s226 + $0x78] sm:$0xff] %v982
      %s999 = smul.u32 16, %s16
      %p1000 = scmp.lt.s32.totalorder %s999, 31
      %s1001 = scalar_select %p1000, %s999, 31
      %s1002 = smul.addr %s1001, 8
      %s1003 = scalar_lea.vmem %s5, %s1002
      // Predicated region
      $region41: #{_forward_impl.1} parent=39 // pred_check
        %p1004 = pneg %p144
      $region42: #{_forward_impl.1} parent=39 // pred_check_branch
        %1006 = sbr.rel (%p1004) target = $region44
      $region43: #{_forward_impl.1} parent=39 // pred_region
        %s1007 = smul.u32 16, %s16
      $region44: #{_forward_impl.1} parent=39 // pred_fallthru
        _
    $region40: #{_forward_impl.1} parent=5 // pred_fallthru
      _
    %p1008 = scmp.le.s32.totalorder 2, %s11
    // Predicated region
    $region45: #{_forward_impl.1} parent=5 // pred_check
      %p1009 = pneg %p1008
    $region46: #{_forward_impl.1} parent=5 // pred_check_branch
      %1011 = sbr.rel (%p1009) target = $region48
    $region47: #{_forward_impl.1} parent=5 // pred_region
      %s1012 = ssub.s32 %s11, 2
      // Predicated region
      $region49: #{_forward_impl.1} parent=47 // pred_check
        %p1013 = pneg %p150
      $region50: #{_forward_impl.1} parent=47 // pred_check_branch
        %1015 = sbr.rel (%p1013) target = $region52
      $region51: #{_forward_impl.1} parent=47 // pred_region
        %s1016 = smul.u32 16, %s17
        %p1017 = scmp.lt.s32.totalorder %s1016, 31
        %s1018 = scalar_select %p1017, %s1016, 31
        %s1019 = smul.addr %s1018, 8
        %s1020 = scalar_lea.vmem %s5, %s1019
      $region52: #{_forward_impl.1} parent=47 // pred_fallthru
        _
    $region48: #{_forward_impl.1} parent=5 // pred_fallthru
      _
  $region6: #{_forward_impl.1} parent=0 // loop_footer
    %s15 = sadd.s32 1, %s11
  $region7: #{_forward_impl.1} parent=0 // loop_footer_branch
    %10 = sbr.rel target = $region3
  $region8: #{_forward_impl.1} parent=0 // loop_exit
    _

</llo_original>
